<compile_context>
chip_gen: v6e
topology: v6e:2x2x1
jax: 0.10.0
libtpu: 0.0.40
codegen_flags: <defaults>
</compile_context>

<pallas_src>
import functools

import jax
import jax.numpy as jnp
from jax import lax
from jax.experimental import pallas as pl
from jax.experimental.pallas import tpu as pltpu

LANES = 128
SLAB_ROWS = 512                 # inner-loop slab: bounds f32 temporaries to ~256 KiB each
TARGET_BLOCK_BYTES = 4 << 20    # ~4 MiB per input block per grid step (HBM-bound sweet spot)


def _round_up(v, m):
    return -(-v // m) * m


def _num_tensorcores():
    """Best-effort TensorCore count of the local device (2 on v7x, else 1)."""
    try:
        dev = jax.devices()[0]
        n = getattr(dev, "num_cores", None)
        if isinstance(n, int) and n >= 1:
            return n
        if "v7" in str(getattr(dev, "device_kind", "")).lower():
            return 2
    except Exception:
        pass
    return 1


def _bce_partial_sum_kernel(x_ref, t_ref, out_ref, *, tile_rows, slab_rows,
                            steps_per_split, steps_total, valid_rows,
                            need_dup_gate, need_ragged, hard_targets):
    c = pl.program_id(0)            # split (parallel axis; sharded across TCs on v7x)
    i = pl.program_id(1)            # step within split (reduction axis)
    blk = c * steps_per_split + i   # UNCLAMPED logical block index
    row0 = blk * tile_rows

    @pl.when(i == 0)
    def _():
        out_ref[...] = jnp.zeros_like(out_ref)

    def slab_bce(xs, ts):
        # Cast after load — HBM traffic stays at the caller's native width.
        xs = xs.astype(jnp.float32)
        ts = ts.astype(jnp.float32)
        if hard_targets:
            # Single-log path for hard {0,1} targets: halves EUP transcendental traffic.
            p = jnp.where(ts > 0.5, xs, 1.0 - xs)
            return -jnp.maximum(jnp.log(p), -100.0)
        # nn.BCELoss clamps each log term at -100 (PyTorch semantics).
        log_x = jnp.maximum(jnp.log(xs), -100.0)
        log_1mx = jnp.maximum(jnp.log(1.0 - xs), -100.0)
        # -(t*log_x + (1-t)*log_1mx) fused to 3 VALU ops.
        return ts * (log_1mx - log_x) - log_1mx

    n_slabs = tile_rows // slab_rows

    def accumulate(masked):
        def body(s, acc):
            off = pl.multiple_of(s * slab_rows, slab_rows)
            bce = slab_bce(x_ref[pl.ds(off, slab_rows), :],
                           t_ref[pl.ds(off, slab_rows), :])
            if masked:
                r = lax.broadcasted_iota(jnp.int32, bce.shape, 0)
                bce = jnp.where(row0 + off + r < valid_rows, bce, 0.0)
            # (slab_rows, 128) -> (8, 128) with VPU adds only; the single cross-lane
            # reduce happens once outside the kernel.
            return acc + bce.reshape(-1, 8, LANES).sum(axis=0)

        acc = lax.fori_loop(0, n_slabs, body, jnp.zeros((8, LANES), jnp.float32))
        out_ref[...] += acc[jnp.newaxis]

    if not need_dup_gate and not need_ragged:
        accumulate(False)                      # fast path: no mask, no gating
    elif need_ragged:
        is_boundary = row0 + tile_rows > valid_rows
        if need_dup_gate:
            is_real = blk < steps_total
            cond_full = jnp.logical_and(is_real, jnp.logical_not(is_boundary))
            cond_mask = jnp.logical_and(is_real, is_boundary)
        else:
            cond_full = jnp.logical_not(is_boundary)
            cond_mask = is_boundary

        @pl.when(cond_full)
        def _():
            accumulate(False)                  # full blocks never pay the mask

        @pl.when(cond_mask)
        def _():
            accumulate(True)                   # only the boundary block is masked
    else:
        @pl.when(blk < steps_total)
        def _():
            accumulate(False)                  # skip clamped duplicate blocks entirely


def focal_loss(inputs, targets, *, alpha=1.0, gamma=2.0, reduce=True,
               hard_targets=False):
    """Pallas TPU implementation of FocalLoss.forward (returns scalar f32)."""
    assert inputs.shape == targets.shape
    n = inputs.size

    x = inputs.reshape(-1)     # row-major flatten, native dtype (no wrapper upcast)
    t = targets.reshape(-1)

    isz_x = jnp.dtype(x.dtype).itemsize
    isz_t = jnp.dtype(t.dtype).itemsize
    grain = max(8, 32 // min(isz_x, isz_t))   # sublane packing of the narrowest dtype

    rows = n // LANES
    n_main = rows * LANES

    bce_sum = jnp.float32(0.0)

    if rows > 0:
        num_splits = min(2, _num_tensorcores())
        if rows < num_splits * grain:
            num_splits = 1

        rows_padded = _round_up(rows, grain)
        target_rows = max(grain, TARGET_BLOCK_BYTES // (LANES * max(isz_x, isz_t)))
        tile_rows = min(target_rows, rows_padded)
        if num_splits > 1:
            # Load-balance across TensorCores: each split gets >= 1 real block.
            per_split = _round_up(-(-rows // num_splits), grain)
            tile_rows = min(tile_rows, per_split)
        if tile_rows > SLAB_ROWS:
            tile_rows = (tile_rows // SLAB_ROWS) * SLAB_ROWS   # multiple of slab & grain
            slab_rows = SLAB_ROWS
        else:
            slab_rows = tile_rows

        steps_total = -(-rows // tile_rows)
        steps_per_split = -(-steps_total // num_splits)
        need_dup_gate = num_splits * steps_per_split != steps_total
        need_ragged = steps_total * tile_rows > rows

        # No-op slice when n is 128-aligned (the common case); the ragged boundary
        # block is masked inside the kernel instead of padded/copied in the wrapper.
        x2 = x[:n_main].reshape(rows, LANES)
        t2 = t[:n_main].reshape(rows, LANES)

        def row_map(c, i):
            b = c * steps_per_split + i
            if need_dup_gate:
                # Clamp so every DMA start is in-bounds; duplicate blocks' compute is
                # skipped in-kernel via pl.when(blk < steps_total) on the UNCLAMPED blk.
                b = jnp.minimum(b, steps_total - 1)
            return (b, 0)

        kernel = functools.partial(
            _bce_partial_sum_kernel,
            tile_rows=tile_rows,
            slab_rows=slab_rows,
            steps_per_split=steps_per_split,
            steps_total=steps_total,
            valid_rows=rows,
            need_dup_gate=need_dup_gate,
            need_ragged=need_ragged,
            hard_targets=hard_targets,
        )

        # 2 inputs x 2 pipeline buffers; cap at 48 MiB so the config also fits v7x's
        # 64 MiB physical VMEM while raising v5e's 16 MiB scoped default when needed.
        buf_bytes = 2 * tile_rows * LANES * (isz_x + isz_t)
        vmem_limit = int(min(48 * 1024 * 1024, buf_bytes + 16 * 1024 * 1024))

        cost = pl.CostEstimate(
            flops=8 * n_main,
            transcendentals=(1 if hard_targets else 2) * n_main,
            bytes_accessed=n_main * (isz_x + isz_t) + num_splits * 8 * LANES * 4,
        )

        partials = pl.pallas_call(
            kernel,
            out_shape=jax.ShapeDtypeStruct((num_splits, 8, LANES), jnp.float32),
            grid_spec=pltpu.PrefetchScalarGridSpec(
                num_scalar_prefetch=0,
                grid=(num_splits, steps_per_split),
                in_specs=[
                    pl.BlockSpec((tile_rows, LANES), row_map),
                    pl.BlockSpec((tile_rows, LANES), row_map),
                ],
                out_specs=pl.BlockSpec((1, 8, LANES), lambda c, i: (c, 0, 0)),
            ),
            compiler_params=pltpu.CompilerParams(
                dimension_semantics=("parallel", "arbitrary"),
                vmem_limit_bytes=vmem_limit,
            ),
            cost_estimate=cost,
        )(x2, t2)

        bce_sum = bce_sum + jnp.sum(partials)

    if n_main < n:
        # Sub-128-element tail: plain JAX, negligible cost.
        xt = x[n_main:].astype(jnp.float32)
        tt = t[n_main:].astype(jnp.float32)
        log_x = jnp.maximum(jnp.log(xt), -100.0)
        log_1mx = jnp.maximum(jnp.log(1.0 - xt), -100.0)
        bce_sum = bce_sum + jnp.sum(tt * (log_1mx - log_x) - log_1mx)

    # Scalar focal transform (matches the PyTorch module, including the epsilon placed
    # on the already-mean-reduced BCE).
    mean_bce = bce_sum / jnp.float32(n) + jnp.float32(1e-07)
    pt = jnp.exp(-mean_bce)
    f_loss = jnp.float32(alpha) * (1.0 - pt) ** jnp.float32(gamma) * mean_bce
    # nn.BCELoss already mean-reduces, so F_loss is a scalar; `reduce` (mean of a
    # scalar) does not change the value — kept for API parity with the module.
    return f_loss


def _focal_loss_ref(inputs, targets, alpha=1.0, gamma=2.0):
    x = inputs.astype(jnp.float32)
    t = targets.astype(jnp.float32)
    log_x = jnp.maximum(jnp.log(x), -100.0)
    log_1mx = jnp.maximum(jnp.log(1.0 - x), -100.0)
    bce = jnp.mean(-(t * log_x + (1.0 - t) * log_1mx)) + 1e-07
    pt = jnp.exp(-bce)
    return alpha * (1.0 - pt) ** gamma * bce


if __name__ == "__main__":
    key = jax.random.PRNGKey(0)

    def check(shape):
        k1, k2 = jax.random.split(jax.random.fold_in(key, sum(shape)))
        inputs = jax.nn.sigmoid(jax.random.normal(k1, shape, dtype=jnp.float32))
        targets = (jax.random.uniform(k2, shape) > 0.5).astype(jnp.float32)
        loss = jax.block_until_ready(focal_loss(inputs, targets, alpha=1.0, gamma=2.0))
        ref = _focal_loss_ref(inputs, targets)
        assert jnp.allclose(loss, ref, rtol=1e-5, atol=1e-6), (shape, loss, ref)

    # NCHW probabilities (as would come out of a sigmoid) and binary targets.
    check((2, 4, 16, 16))    # 128-aligned, single block
    check((3, 5, 7, 11))     # ragged rows + sub-128 tail (masked boundary path)
    check((4, 8, 64, 64))    # multi-slab inner fori_loop path

    print("KERNEL_OK")
</pallas_src>

<mosaic_0001>
module attributes {stable_mosaic.version = 11 : i64} {
  func.func @_bce_partial_sum_kernel(%arg0: i32, %arg1: i32, %arg2: memref<16x128xf32, #tpu.memory_space<vmem>>, %arg3: memref<16x128xf32, #tpu.memory_space<vmem>>, %arg4: memref<1x8x128xf32, #tpu.memory_space<vmem>>) attributes {dimension_semantics = [#tpu.dimension_semantics<parallel>, #tpu.dimension_semantics<arbitrary>], iteration_bounds = array<i64: 1, 1>, scalar_prefetch = 0 : i64, scratch_operands = 0 : i64, tpu.core_type = #tpu.core_type<tc>, window_params = [{transform_indices = @transform_0, window_bounds = array<i64: 16, 128>}, {transform_indices = @transform_1, window_bounds = array<i64: 16, 128>}, {transform_indices = @transform_2, window_bounds = array<i64: 1, 8, 128>}]} {
    %c0_i32 = arith.constant 0 : i32
    %0 = arith.cmpi eq, %arg1, %c0_i32 : i32
    %1 = arith.extui %0 : i1 to i32
    %c0_i32_0 = arith.constant 0 : i32
    %2 = arith.cmpi ne, %1, %c0_i32_0 : i32
    scf.if %2 {
      %cst_13 = arith.constant 0.000000e+00 : f32
      %28 = vector.broadcast %cst_13 : f32 to vector<1x8x128xf32>
      %c0_14 = arith.constant 0 : index
      %c0_15 = arith.constant 0 : index
      %c0_16 = arith.constant 0 : index
      %29 = vector.load %arg4[%c0_14, %c0_15, %c0_16] : memref<1x8x128xf32, #tpu.memory_space<vmem>>, vector<1x8x128xf32>
      tpu.vector_store %arg4[%c0_14, %c0_15, %c0_16], %28 {strides = array<i32>} : memref<1x8x128xf32, #tpu.memory_space<vmem>>, vector<1x8x128xf32>,
    } else {
    }
    %cst = arith.constant 0.000000e+00 : f32
    %3 = vector.broadcast %cst : f32 to vector<8x128xf32>
    %c0_i32_1 = arith.constant 0 : i32
    %c16_i32 = arith.constant 16 : i32
    %4 = arith.muli %c0_i32_1, %c16_i32 : i32
    %5 = tpu.assume_multiple %4, 16 : i32
    %6 = arith.index_cast %5 : i32 to index
    %c0 = arith.constant 0 : index
    %7 = vector.load %arg2[%6, %c0] : memref<16x128xf32, #tpu.memory_space<vmem>>, vector<16x128xf32>
    %8 = arith.index_cast %5 : i32 to index
    %c0_2 = arith.constant 0 : index
    %9 = vector.load %arg3[%8, %c0_2] : memref<16x128xf32, #tpu.memory_space<vmem>>, vector<16x128xf32>
    %10 = math.log %7 : vector<16x128xf32>
    %cst_3 = arith.constant -1.000000e+02 : f32
    %11 = vector.broadcast %cst_3 : f32 to vector<16x128xf32>
    %12 = arith.maximumf %10, %11 : vector<16x128xf32>
    %cst_4 = arith.constant 1.000000e+00 : f32
    %13 = vector.broadcast %cst_4 : f32 to vector<16x128xf32>
    %14 = arith.subf %13, %7 : vector<16x128xf32>
    %15 = math.log %14 : vector<16x128xf32>
    %cst_5 = arith.constant -1.000000e+02 : f32
    %16 = vector.broadcast %cst_5 : f32 to vector<16x128xf32>
    %17 = arith.maximumf %15, %16 : vector<16x128xf32>
    %18 = arith.subf %17, %12 : vector<16x128xf32>
    %19 = arith.mulf %9, %18 : vector<16x128xf32>
    %20 = arith.subf %19, %17 : vector<16x128xf32>
    %21 = vector.shape_cast %20 : vector<16x128xf32> to vector<2x8x128xf32>
    %cst_6 = arith.constant dense<0.000000e+00> : vector<8x128xf32>
    %22 = vector.multi_reduction <add>, %21, %cst_6 [0] : vector<2x8x128xf32> to vector<8x128xf32>
    %23 = arith.addf %3, %22 : vector<8x128xf32>
    %c1_i32 = arith.constant 1 : i32
    %c0_7 = arith.constant 0 : index
    %c0_8 = arith.constant 0 : index
    %c0_9 = arith.constant 0 : index
    %24 = vector.load %arg4[%c0_7, %c0_8, %c0_9] : memref<1x8x128xf32, #tpu.memory_space<vmem>>, vector<1x8x128xf32>
    %25 = vector.shape_cast %23 : vector<8x128xf32> to vector<1x8x128xf32>
    %26 = arith.addf %24, %25 : vector<1x8x128xf32>
    %c0_10 = arith.constant 0 : index
    %c0_11 = arith.constant 0 : index
    %c0_12 = arith.constant 0 : index
    %27 = vector.load %arg4[%c0_10, %c0_11, %c0_12] : memref<1x8x128xf32, #tpu.memory_space<vmem>>, vector<1x8x128xf32>
    tpu.vector_store %arg4[%c0_10, %c0_11, %c0_12], %26 {strides = array<i32>} : memref<1x8x128xf32, #tpu.memory_space<vmem>>, vector<1x8x128xf32>,
    return
  }
  func.func @transform_0(%arg0: i32, %arg1: i32) -> (i32, i32) {
    %c1_i32 = arith.constant 1 : i32
    %0 = arith.muli %arg0, %c1_i32 : i32
    %1 = arith.addi %0, %arg1 : i32
    %c0_i32 = arith.constant 0 : i32
    %c0_i32_0 = arith.constant 0 : i32
    return %1, %c0_i32 : i32, i32
  }
  func.func @transform_1(%arg0: i32, %arg1: i32) -> (i32, i32) {
    %c1_i32 = arith.constant 1 : i32
    %0 = arith.muli %arg0, %c1_i32 : i32
    %1 = arith.addi %0, %arg1 : i32
    %c0_i32 = arith.constant 0 : i32
    %c0_i32_0 = arith.constant 0 : i32
    return %1, %c0_i32 : i32, i32
  }
  func.func @transform_2(%arg0: i32, %arg1: i32) -> (i32, i32, i32) {
    %c0_i32 = arith.constant 0 : i32
    %c0_i32_0 = arith.constant 0 : i32
    %c0_i32_1 = arith.constant 0 : i32
    return %arg0, %c0_i32, %c0_i32_0 : i32, i32, i32
  }
}

</mosaic_0001>

<llo_original>
// kernel: tpu_custom_call.1
$region0: #{tpu_custom_call.1}
  #allocation0 [shape = 'u32[]', space=smem, size = 0x4, offset = 0x4, fixed_abs, tag = 'smem constant byte address 0x4 - core index']
  #allocation1 [shape = 'u32[144,128]{1,0:T(1,128)}', space=vmem, size = 0x12000, scoped, tag = 'internal scratch']
  %s0 = inlined_call_operand.hbm [shape: f32[16,128], index: 0, kind: input, shape index: {}]
  %s1 = inlined_call_operand.hbm [shape: f32[16,128], index: 1, kind: input, shape index: {}]
  %s2 = inlined_call_operand.hbm [shape: f32[1,8,128], index: 2, kind: output, shape index: {}]
  %s3 = sld [smem:[#allocation0]]
  $region30: #{tpu_custom_call.1} parent=0
    _
  %s5 = ssub.s32 1, %s3
  %s6 = scalar_select 0, %s5, %s3
  $region1: #{tpu_custom_call.1} parent=0
    #allocation2 [shape = 'u8[8192]{0}', space=vmem, size = 0x2000, scoped, tag = 'input window, operand 0, single buffered']
    #allocation3 [shape = 's32[1]{0}', space=sflag, size = 0x4, scoped, tag = 'scoped memory for tpu_custom_call.1']
    #allocation4 [shape = 's32[1]{0}', space=sflag, size = 0x4, scoped, tag = 'scoped memory for tpu_custom_call.1']
    #allocation5 [shape = 'u8[8192]{0}', space=vmem, size = 0x2000, scoped, tag = 'input window, operand 1, single buffered']
    #allocation6 [shape = 's32[1]{0}', space=sflag, size = 0x4, scoped, tag = 'scoped memory for tpu_custom_call.1']
    #allocation7 [shape = 'u8[4096]{0}', space=vmem, size = 0x1000, scoped, tag = 'output window, operand 0, single buffered']
    %7 = vsyncpa [#allocation3], 0
    %8 = vsyncpa [#allocation6], 0
    %9 = vsyncpa [#allocation4], 0
    // Predicated region
    $region2: #{tpu_custom_call.1} parent=1 // pred_check
      _
    $region3: #{tpu_custom_call.1} parent=1 // pred_check_branch
      %11 = sbr.rel (0) target = $region5
    $region4: #{tpu_custom_call.1} parent=1 // pred_region
      %s12 = sadd.s32 0, 0
      %s13 = smul.u32 2, %s12
      %s15 = ssub.s32 256, 256
      %16 = vsyncadd [#allocation3], %s15
      %s17 = smul.addr %s13, 128
      %s18 = scalar_lea.hbm %s0, %s17
      %s19 = sshll.u32 [#allocation2], 4
      %s20 = int_to_ptr.vmem [resolvable:$true] %s19
      %25 = dma.hbm_to_vmem [thread:$0]  %s18, 256, %s20, [#allocation3], 128, 128, 8
    $region5: #{tpu_custom_call.1} parent=1 // pred_fallthru
      _
    // Predicated region
    $region6: #{tpu_custom_call.1} parent=1 // pred_check
      _
    $region7: #{tpu_custom_call.1} parent=1 // pred_check_branch
      %27 = sbr.rel (0) target = $region9
    $region8: #{tpu_custom_call.1} parent=1 // pred_region
      %s28 = sadd.s32 0, 0
      %s29 = smul.u32 2, %s28
      %s31 = ssub.s32 256, 256
      %32 = vsyncadd [#allocation6], %s31
      %s33 = smul.addr %s29, 128
      %s34 = scalar_lea.hbm %s1, %s33
      %s35 = sshll.u32 [#allocation5], 4
      %s36 = int_to_ptr.vmem [resolvable:$true] %s35
      %41 = dma.hbm_to_vmem [thread:$0]  %s34, 256, %s36, [#allocation6], 128, 128, 8
    $region9: #{tpu_custom_call.1} parent=1 // pred_fallthru
      _
    // Predicated region
    $region10: #{tpu_custom_call.1} parent=1 // pred_check
      _
    $region11: #{tpu_custom_call.1} parent=1 // pred_check_branch
      %43 = sbr.rel (0) target = $region13
    $region12: #{tpu_custom_call.1} parent=1 // pred_region
      %44 = dma.done [#allocation3], 256
    $region13: #{tpu_custom_call.1} parent=1 // pred_fallthru
      _
    // Predicated region
    $region14: #{tpu_custom_call.1} parent=1 // pred_check
      _
    $region15: #{tpu_custom_call.1} parent=1 // pred_check_branch
      %46 = sbr.rel (0) target = $region17
    $region16: #{tpu_custom_call.1} parent=1 // pred_region
      %47 = dma.done [#allocation6], 256
    $region17: #{tpu_custom_call.1} parent=1 // pred_fallthru
      _
    %s48 = sadd.s32 0, 0
    %s49 = smul.u32 2, %s48
    %s50 = sadd.s32 0, 0
    %s51 = smul.u32 2, %s50
    %p52 = scmp.eq.s32.totalorder 0, 0
    // Predicated region
    $region18: #{tpu_custom_call.1} parent=1 // pred_check
      %p53 = pneg %p52
    $region19: #{tpu_custom_call.1} parent=1 // pred_check_branch
      %55 = sbr.rel (%p53) target = $region21
    $region20: #{tpu_custom_call.1} parent=1 // pred_region
      %56 = vst [vmem:[#allocation7] sm:$0xff] 0.0
    $region21: #{tpu_custom_call.1} parent=1 // pred_fallthru
      _
    %v57 = vld [vmem:[#allocation2] sm:$0xff]
    %v58 = vld [vmem:[#allocation2 + $0x8] sm:$0xff]
    %v59 = vld [vmem:[#allocation5] sm:$0xff]
    %v60 = vld [vmem:[#allocation5 + $0x8] sm:$0xff]
    %v61 = vlog2.pop %v57
    %v62 = vmul.f32 %v61, 0.6931472
    %v63 = vlog2.pop %v58
    %v64 = vmul.f32 %v63, 0.6931472
    %v65 = vmax.f32 %v62, -100.0
    %v66 = vmax.f32 %v64, -100.0
    %v67 = vsub.f32 1.0, %v57
    %v68 = vsub.f32 1.0, %v58
    %v69 = vlog2.pop %v67
    %v70 = vmul.f32 %v69, 0.6931472
    %v71 = vlog2.pop %v68
    %v72 = vmul.f32 %v71, 0.6931472
    %v73 = vmax.f32 %v70, -100.0
    %v74 = vmax.f32 %v72, -100.0
    %v75 = vsub.f32 %v73, %v65
    %v76 = vsub.f32 %v74, %v66
    %v77 = vmul.f32 %v59, %v75
    %v78 = vmul.f32 %v60, %v76
    %v79 = vsub.f32 %v77, %v73
    %v80 = vsub.f32 %v78, %v74
    %v81 = vadd.f32 %v79, %v80
    %v82 = vadd.f32 %v81, 0.0
    %v83 = vld [vmem:[#allocation7] sm:$0xff]
    %v84 = vadd.f32 %v83, %v82
    %85 = vst [vmem:[#allocation7] sm:$0xff] %v84
    // Predicated region
    $region22: #{tpu_custom_call.1} parent=1 // pred_check
      _
    $region23: #{tpu_custom_call.1} parent=1 // pred_check_branch
      %87 = sbr.rel (0) target = $region25
    $region24: #{tpu_custom_call.1} parent=1 // pred_region
      %s89 = ssub.s32 128, 128
      %90 = vsyncadd [#allocation4], %s89
      %s92 = sshll.u32 [#allocation7], 4
      %s93 = int_to_ptr.vmem [resolvable:$true] %s92
      %95 = dma.vmem_to_hbm [thread:$0]  %s93, 128, %s2, [#allocation4]
    $region25: #{tpu_custom_call.1} parent=1 // pred_fallthru
      _
    // Predicated region
    $region26: #{tpu_custom_call.1} parent=1 // pred_check
      _
    $region27: #{tpu_custom_call.1} parent=1 // pred_check_branch
      %97 = sbr.rel (0) target = $region29
    $region28: #{tpu_custom_call.1} parent=1 // pred_region
      %98 = dma.done [#allocation4], 128
    $region29: #{tpu_custom_call.1} parent=1 // pred_fallthru
      _
    %99 = vsyncpa [#allocation3], 1
    %100 = vsyncpa [#allocation6], 1
    %101 = vsyncpa [#allocation4], 1

</llo_original>
